<compile_context>
chip_gen: v6e
topology: v6e:2x2x1
jax: 0.10.0
libtpu: 0.0.40
codegen_flags: <defaults>
</compile_context>

<pallas_src>
import jax
import jax.numpy as jnp
import numpy as np
from jax.experimental import pallas as pl
from jax.experimental.pallas import tpu as pltpu


# ----------------------------- Pallas kernel --------------------------------
def _lstm4_headless_kernel(
    x_ref,      # (B, D_in)   headless input (output of the removed first Linear)
    h_ref,      # (B, H)      previous hidden state
    c_ref,      # (B, H)      previous cell state
    w_ref,      # (K, 4H)     fused weight slab, K = 128:
                #               rows 0:D_in      folded input->gate (W_ff @ W_ih stacked)
                #               rows D_in:D_in+H hidden->gate        (W_hh stacked)
                #               row  D_in+H      combined gate bias
                #               rest             zeros
    h_out_ref,  # (B, H)
    c_out_ref,  # (B, H)
):
    B, D = x_ref.shape
    H = h_out_ref.shape[-1]
    K = w_ref.shape[0]
    n_ones = K - (D + H)   # lanes D+H..K-1 carry constant 1.0; row D+H is the bias

    relu_x = jnp.maximum(x_ref[...], 0.0)          # ff[1:] ReLU
    h_prev = h_ref[...]
    c_prev = c_ref[...]

    # Lane-dense (B, 128) activation slab: [relu(x) | h | 1.0 ... 1.0].
    a = jnp.concatenate(
        [relu_x, h_prev, jnp.ones((B, n_ones), jnp.float32)], axis=1)

    # ONE MXU matmul produces the whole gate slab (bias included via the 1-lanes).
    z = jnp.dot(a, w_ref[...], preferred_element_type=jnp.float32)   # (B, 4H)

    # Gate nonlinearities: one full-slab sigmoid + tanh on the g slice (EUP slot
    # is free at this size).  PyTorch gate order [i, f, g, o].
    s = jax.nn.sigmoid(z)
    i_g = s[:, 0 * H:1 * H]
    f_g = s[:, 1 * H:2 * H]
    o_g = s[:, 3 * H:4 * H]
    g_g = jnp.tanh(z[:, 2 * H:3 * H])

    c_new = f_g * c_prev + i_g * g_g
    h_new = o_g * jnp.tanh(c_new)

    h_out_ref[...] = h_new
    c_out_ref[...] = c_new


# ------------------------------ wrapper --------------------------------------
def _forward_impl(x, hidden, kparams):
    """Forward pass of LSTMModel4Headless. Returns dict like the torch module."""
    h0, c0 = hidden
    B, H = h0.shape
    D = x.shape[-1]
    K = kparams["w"].shape[0]

    # Enforce the lane-dense / single-vreg assumptions the kernel relies on.
    assert B % 8 == 0, "batch must be a multiple of the 8 sublanes"
    assert 4 * H == 128, "gate slab must be exactly 128 lanes (H == 32)"
    assert D + H + 1 <= K == 128, "activation slab must fit a 128-deep contraction"

    vmem = pl.BlockSpec(memory_space=pltpu.MemorySpace.VMEM)
    h_new, c_new = pl.pallas_call(
        _lstm4_headless_kernel,
        out_shape=(
            jax.ShapeDtypeStruct((B, H), jnp.float32),
            jax.ShapeDtypeStruct((B, H), jnp.float32),
        ),
        in_specs=[vmem] * 4,
        out_specs=(vmem, vmem),
        # Recurrent state updated in place: h0 -> h_out, c0 -> c_out.
        input_output_aliases={1: 0, 2: 1},
    )(x, h0, c0, kparams["w"])

    return {"hidden": (h_new, c_new), "output": h_new, "misc": {}}


# Donate the hidden tuple so the pallas in/out aliasing is honored in place
# (otherwise XLA inserts defensive copies of h0/c0 every call).
lstm_model4_headless_forward = jax.jit(_forward_impl, donate_argnums=(1,))


# ------------------------ deterministic parameter init -----------------------
def init_raw_params(key, d_in, d_lstm_in, hidden):
    """Torch-like uniform(-1/sqrt(fan), 1/sqrt(fan)) init, per-gate layout."""
    ks = jax.random.split(key, 6)

    def unif(k, shape, fan):
        bound = 1.0 / np.sqrt(fan)
        return jax.random.uniform(k, shape, jnp.float32, -bound, bound)

    # Headless ff: Linear(d_in -> d_lstm_in), stored as (in, out).
    w_ff = unif(ks[0], (d_in, d_lstm_in), d_in)
    b_ff = unif(ks[1], (1, d_lstm_in), d_in)

    # LSTMCell(d_lstm_in, hidden): per-gate [i, f, g, o], pre-transposed to (in, H).
    w_ih = unif(ks[2], (4, d_lstm_in, hidden), hidden)
    w_hh = unif(ks[3], (4, hidden, hidden), hidden)
    b_ih = unif(ks[4], (4, 1, hidden), hidden)
    b_hh = unif(ks[5], (4, 1, hidden), hidden)

    return {"w_ff": w_ff, "b_ff": b_ff, "w_ih": w_ih, "w_hh": w_hh,
            "b_ih": b_ih, "b_hh": b_hh}


def prep_kernel_params(raw):
    """Offline re-layout / folding for the single-matmul fused kernel.

    * stack the 4 gates along the lane axis -> (in, 4H) (4H = 128, lane-dense)
    * fold the headless ff Linear (and its bias) into the input->gate path
    * stack [folded input->gate ; hidden->gate ; bias row ; zero pad] into one
      (128, 4H) weight slab so the kernel needs exactly ONE MXU matmul
    """
    H = raw["w_hh"].shape[-1]
    d_in = raw["w_ff"].shape[0]
    K = 128

    w_ih_stk = jnp.concatenate([raw["w_ih"][k] for k in range(4)], axis=1)  # (L, 4H)
    w_hh_stk = jnp.concatenate([raw["w_hh"][k] for k in range(4)], axis=1)  # (H, 4H)
    b_stk = jnp.concatenate(
        [raw["b_ih"][k] + raw["b_hh"][k] for k in range(4)], axis=1)        # (1, 4H)

    # Fold ff Linear: relu(x) @ (W_ff @ W_ih_stk) + ...; bias b_ff @ W_ih_stk folded in.
    w_x = raw["w_ff"] @ w_ih_stk                 # (D_in, 4H)
    b = raw["b_ff"] @ w_ih_stk + b_stk           # (1, 4H)

    n_pad = K - (d_in + H + 1)
    assert n_pad >= 0
    w_slab = jnp.concatenate(
        [w_x,
         w_hh_stk,
         b,
         jnp.zeros((n_pad, 4 * H), jnp.float32)], axis=0)   # (128, 4H)

    return {"w": w_slab.astype(jnp.float32)}


# ------------------------------ pure-JAX reference ----------------------------
def reference_forward(x, hidden, raw):
    """Exact original math (unfused, per-gate) for validation."""
    h0, c0 = hidden
    y = jnp.maximum(x, 0.0) @ raw["w_ff"] + raw["b_ff"]
    zs = [
        y @ raw["w_ih"][k] + h0 @ raw["w_hh"][k] + raw["b_ih"][k] + raw["b_hh"][k]
        for k in range(4)
    ]
    i_g, f_g = jax.nn.sigmoid(zs[0]), jax.nn.sigmoid(zs[1])
    g_g, o_g = jnp.tanh(zs[2]), jax.nn.sigmoid(zs[3])
    c_new = f_g * c0 + i_g * g_g
    h_new = o_g * jnp.tanh(c_new)
    return h_new, c_new


# ---------------------------------- main --------------------------------------
if __name__ == "__main__":
    # ff_size = [64, 32, 32] -> headless input dim 64, LSTM input 32, hidden 32.
    B, D_IN, D_LSTM_IN, HID = 8, 64, 32, 32

    key = jax.random.PRNGKey(0)
    k_x, k_p = jax.random.split(key)

    x = jax.random.normal(k_x, (B, D_IN), jnp.float32)
    h0 = jnp.zeros((B, HID), jnp.float32)  # init_hidden(batch_size)
    c0 = jnp.zeros((B, HID), jnp.float32)

    raw = init_raw_params(k_p, D_IN, D_LSTM_IN, HID)
    kparams = prep_kernel_params(raw)

    # Compute the reference BEFORE the kernel call: h0/c0 are donated to the
    # jitted forward and their buffers are invalidated afterwards.
    h_ref, c_ref = reference_forward(x, (h0, c0), raw)
    h_ref = np.asarray(h_ref)
    c_ref = np.asarray(c_ref)

    out = lstm_model4_headless_forward(x, (h0, c0), kparams)
    jax.block_until_ready(out)

    np.testing.assert_allclose(np.asarray(out["output"]), h_ref,
                               rtol=1e-5, atol=1e-5)
    np.testing.assert_allclose(np.asarray(out["hidden"][1]), c_ref,
                               rtol=1e-5, atol=1e-5)

    print("KERNEL_OK")
</pallas_src>

<mosaic_0001>
module attributes {stable_mosaic.version = 11 : i64} {
  func.func @_lstm4_headless_kernel(%arg0: memref<8x64xf32, #tpu.memory_space<vmem>>, %arg1: memref<8x32xf32, #tpu.memory_space<vmem>>, %arg2: memref<8x32xf32, #tpu.memory_space<vmem>>, %arg3: memref<128x128xf32, #tpu.memory_space<vmem>>, %arg4: memref<8x32xf32, #tpu.memory_space<vmem>>, %arg5: memref<8x32xf32, #tpu.memory_space<vmem>>) attributes {dimension_semantics = [], scalar_prefetch = 0 : i64, scratch_operands = 0 : i64, tpu.core_type = #tpu.core_type<tc>} {
    %c0 = arith.constant 0 : index
    %c0_0 = arith.constant 0 : index
    %0 = vector.load %arg0[%c0, %c0_0] : memref<8x64xf32, #tpu.memory_space<vmem>>, vector<8x64xf32>
    %cst = arith.constant 0.000000e+00 : f32
    %1 = vector.broadcast %cst : f32 to vector<8x64xf32>
    %2 = arith.maximumf %0, %1 : vector<8x64xf32>
    %c0_1 = arith.constant 0 : index
    %c0_2 = arith.constant 0 : index
    %3 = vector.load %arg1[%c0_1, %c0_2] : memref<8x32xf32, #tpu.memory_space<vmem>>, vector<8x32xf32>
    %c0_3 = arith.constant 0 : index
    %c0_4 = arith.constant 0 : index
    %4 = vector.load %arg2[%c0_3, %c0_4] : memref<8x32xf32, #tpu.memory_space<vmem>>, vector<8x32xf32>
    %cst_5 = arith.constant 1.000000e+00 : f32
    %5 = vector.broadcast %cst_5 : f32 to vector<8x32xf32>
    %6 = tpu.concatenate %2, %3, %5 in 1 : vector<8x64xf32>, vector<8x32xf32>, vector<8x32xf32> -> vector<8x128xf32>
    %c0_6 = arith.constant 0 : index
    %c0_7 = arith.constant 0 : index
    %7 = vector.load %arg3[%c0_6, %c0_7] : memref<128x128xf32, #tpu.memory_space<vmem>>, vector<128x128xf32>
    %cst_8 = arith.constant dense<0.000000e+00> : vector<8x128xf32>
    %8 = tpu.matmul %6, %7, %cst_8 {dimension_numbers = #tpu.dot_dimension_numbers<[1], [0], [0], [1], [0, 0, 1, 1], [], []>} : vector<8x128xf32>, vector<128x128xf32>, vector<8x128xf32> -> vector<8x128xf32>
    %9 = arith.negf %8 : vector<8x128xf32>
    %10 = math.exp %9 : vector<8x128xf32>
    %cst_9 = arith.constant 1.000000e+00 : f32
    %11 = vector.broadcast %cst_9 : f32 to vector<8x128xf32>
    %12 = arith.addf %11, %10 : vector<8x128xf32>
    %13 = arith.divf %11, %12 : vector<8x128xf32>
    %14 = vector.extract_strided_slice %13 {offsets = [0, 0], sizes = [8, 32], strides = [1, 1]} : vector<8x128xf32> to vector<8x32xf32>
    %15 = vector.extract_strided_slice %13 {offsets = [0, 32], sizes = [8, 32], strides = [1, 1]} : vector<8x128xf32> to vector<8x32xf32>
    %16 = vector.extract_strided_slice %13 {offsets = [0, 96], sizes = [8, 32], strides = [1, 1]} : vector<8x128xf32> to vector<8x32xf32>
    %17 = vector.extract_strided_slice %8 {offsets = [0, 64], sizes = [8, 32], strides = [1, 1]} : vector<8x128xf32> to vector<8x32xf32>
    %18 = math.tanh %17 : vector<8x32xf32>
    %19 = arith.mulf %15, %4 : vector<8x32xf32>
    %20 = arith.mulf %14, %18 : vector<8x32xf32>
    %21 = arith.addf %19, %20 : vector<8x32xf32>
    %22 = math.tanh %21 : vector<8x32xf32>
    %23 = arith.mulf %16, %22 : vector<8x32xf32>
    %c0_10 = arith.constant 0 : index
    %c0_11 = arith.constant 0 : index
    %24 = vector.load %arg4[%c0_10, %c0_11] : memref<8x32xf32, #tpu.memory_space<vmem>>, vector<8x32xf32>
    tpu.vector_store %arg4[%c0_10, %c0_11], %23 {strides = array<i32>} : memref<8x32xf32, #tpu.memory_space<vmem>>, vector<8x32xf32>,
    %c0_12 = arith.constant 0 : index
    %c0_13 = arith.constant 0 : index
    %25 = vector.load %arg5[%c0_12, %c0_13] : memref<8x32xf32, #tpu.memory_space<vmem>>, vector<8x32xf32>
    tpu.vector_store %arg5[%c0_12, %c0_13], %21 {strides = array<i32>} : memref<8x32xf32, #tpu.memory_space<vmem>>, vector<8x32xf32>,
    return
  }
}

</mosaic_0001>

<llo_original>
// kernel: _forward_impl.1
$region0: #{_forward_impl.1}
  #allocation0 [shape = 'u32[]', space=smem, size = 0x4, offset = 0x4, fixed_abs, tag = 'smem constant byte address 0x4 - core index']
  #allocation1 [shape = 'u32[144,128]{1,0:T(1,128)}', space=vmem, size = 0x12000, scoped, tag = 'internal scratch']
  %s0 = inlined_call_operand.hbm [shape: f32[8,64], index: 0, kind: input, shape index: {}]
  %s1 = inlined_call_operand.hbm [shape: f32[8,32], index: 1, kind: input, shape index: {}, may-alias: {1,4}]
  %s2 = inlined_call_operand.hbm [shape: f32[8,32], index: 2, kind: input, shape index: {}, may-alias: {2,5}]
  %s3 = inlined_call_operand.hbm [shape: f32[128,128], index: 3, kind: input, shape index: {}]
  %s4 = inlined_call_operand.hbm [shape: f32[8,32], index: 4, kind: output, shape index: {0}, may-alias: {1,4}]
  %s5 = inlined_call_operand.hbm [shape: f32[8,32], index: 5, kind: output, shape index: {1}, may-alias: {2,5}]
  %6 = xla_tuple %s4, %s5
  %s7 = sld [smem:[#allocation0]]
  $region50: #{_forward_impl.1} parent=0
    _
  %s9 = ssub.s32 1, %s7
  %s10 = scalar_select 0, %s9, %s7
  $region1: #{_forward_impl.1} parent=0
    #allocation2 [shape = 'u8[4096]{0}', space=vmem, size = 0x1000, scoped, tag = 'input window, operand 0, single buffered']
    #allocation3 [shape = 's32[1]{0}', space=sflag, size = 0x4, scoped, tag = 'scoped memory for _forward_impl.1']
    #allocation4 [shape = 's32[1]{0}', space=sflag, size = 0x4, scoped, tag = 'scoped memory for _forward_impl.1']
    #allocation5 [shape = 'u8[4096]{0}', space=vmem, size = 0x1000, scoped, tag = 'input window, operand 1, single buffered']
    #allocation6 [shape = 's32[1]{0}', space=sflag, size = 0x4, scoped, tag = 'scoped memory for _forward_impl.1']
    #allocation7 [shape = 'u8[4096]{0}', space=vmem, size = 0x1000, scoped, tag = 'input window, operand 2, single buffered']
    #allocation8 [shape = 'u8[65536]{0}', space=vmem, size = 0x10000, scoped, tag = 'input window, operand 3, single buffered']
    #allocation9 [shape = 's32[1]{0}', space=sflag, size = 0x4, scoped, tag = 'scoped memory for _forward_impl.1']
    #allocation10 [shape = 'u8[4096]{0}', space=vmem, size = 0x1000, scoped, tag = 'output window, operand 0, single buffered']
    #allocation11 [shape = 'u8[4096]{0}', space=vmem, size = 0x1000, scoped, tag = 'output window, operand 1, single buffered']
    #allocation12 [shape = 's32[1]{0}', space=sflag, size = 0x4, scoped, tag = 'scoped memory for _forward_impl.1']
    %11 = vsyncpa [#allocation3], 0
    %12 = vsyncpa [#allocation6], 0
    %13 = vsyncpa [#allocation9], 0
    %14 = vsyncpa [#allocation4], 0
    %15 = vsyncpa [#allocation12], 0
    // Predicated region
    $region2: #{_forward_impl.1} parent=1 // pred_check
      _
    $region3: #{_forward_impl.1} parent=1 // pred_check_branch
      %17 = sbr.rel (0) target = $region5
    $region4: #{_forward_impl.1} parent=1 // pred_region
      %s19 = ssub.s32 128, 128
      %20 = vsyncadd [#allocation3], %s19
      %s22 = sshll.u32 [#allocation2], 4
      %s23 = int_to_ptr.vmem [resolvable:$true] %s22
      %25 = dma.hbm_to_vmem [thread:$0]  %s0, 128, %s23, [#allocation3]
    $region5: #{_forward_impl.1} parent=1 // pred_fallthru
      _
    // Predicated region
    $region6: #{_forward_impl.1} parent=1 // pred_check
      _
    $region7: #{_forward_impl.1} parent=1 // pred_check_branch
      %27 = sbr.rel (0) target = $region9
    $region8: #{_forward_impl.1} parent=1 // pred_region
      %s29 = ssub.s32 128, 128
      %30 = vsyncadd [#allocation6], %s29
      %s32 = sshll.u32 [#allocation5], 4
      %s33 = int_to_ptr.vmem [resolvable:$true] %s32
      %35 = dma.hbm_to_vmem [thread:$0]  %s1, 128, %s33, [#allocation6]
    $region9: #{_forward_impl.1} parent=1 // pred_fallthru
      _
    // Predicated region
    $region10: #{_forward_impl.1} parent=1 // pred_check
      _
    $region11: #{_forward_impl.1} parent=1 // pred_check_branch
      %37 = sbr.rel (0) target = $region13
    $region12: #{_forward_impl.1} parent=1 // pred_region
      %s39 = ssub.s32 128, 128
      %40 = vsyncadd [#allocation6], %s39
      %s42 = sshll.u32 [#allocation7], 4
      %s43 = int_to_ptr.vmem [resolvable:$true] %s42
      %45 = dma.hbm_to_vmem [thread:$0]  %s2, 128, %s43, [#allocation6]
    $region13: #{_forward_impl.1} parent=1 // pred_fallthru
      _
    // Predicated region
    $region14: #{_forward_impl.1} parent=1 // pred_check
      _
    $region15: #{_forward_impl.1} parent=1 // pred_check_branch
      %47 = sbr.rel (0) target = $region17
    $region16: #{_forward_impl.1} parent=1 // pred_region
      %s49 = ssub.s32 2048, 2048
      %50 = vsyncadd [#allocation9], %s49
      %s51 = sshll.u32 [#allocation8], 4
      %s52 = int_to_ptr.vmem [resolvable:$true] %s51
      %57 = dma.hbm_to_vmem [thread:$0]  %s3, 2048, %s52, [#allocation9], 128, 128, 8
    $region17: #{_forward_impl.1} parent=1 // pred_fallthru
      _
    // Predicated region
    $region18: #{_forward_impl.1} parent=1 // pred_check
      _
    $region19: #{_forward_impl.1} parent=1 // pred_check_branch
      %59 = sbr.rel (0) target = $region21
    $region20: #{_forward_impl.1} parent=1 // pred_region
      %60 = dma.done [#allocation3], 128
    $region21: #{_forward_impl.1} parent=1 // pred_fallthru
      _
    // Predicated region
    $region22: #{_forward_impl.1} parent=1 // pred_check
      _
    $region23: #{_forward_impl.1} parent=1 // pred_check_branch
      %62 = sbr.rel (0) target = $region25
    $region24: #{_forward_impl.1} parent=1 // pred_region
      %63 = dma.done [#allocation6], 128
    $region25: #{_forward_impl.1} parent=1 // pred_fallthru
      _
    // Predicated region
    $region26: #{_forward_impl.1} parent=1 // pred_check
      _
    $region27: #{_forward_impl.1} parent=1 // pred_check_branch
      %65 = sbr.rel (0) target = $region29
    $region28: #{_forward_impl.1} parent=1 // pred_region
      %66 = dma.done [#allocation6], 128
    $region29: #{_forward_impl.1} parent=1 // pred_fallthru
      _
    // Predicated region
    $region30: #{_forward_impl.1} parent=1 // pred_check
      _
    $region31: #{_forward_impl.1} parent=1 // pred_check_branch
      %68 = sbr.rel (0) target = $region33
    $region32: #{_forward_impl.1} parent=1 // pred_region
      %69 = dma.done [#allocation9], 2048
    $region33: #{_forward_impl.1} parent=1 // pred_fallthru
      _
    %v70 = vld [vmem:[#allocation2] sm:$0xff]
    %v71 = vmax.f32 %v70, 0.0
    %v72 = vld [vmem:[#allocation5] sm:$0xff]
    %v73 = vld [vmem:[#allocation7] sm:$0xff]
    %75 = vrot.lane.b32.xlu0 %v72, 64
    %v76 = vpop.permute.xlu0 %75
    %vm78 = vcmask 523264
    %v79 = vsel %vm78, %v71, %v76
    %vm80 = vcmask 785408
    %v81 = vsel %vm80, %v79, 1.0
    %v82 = vld [vmem:[#allocation8] sm:$0xff]
    %v83 = vld [vmem:[#allocation8 + $0x8] sm:$0xff]
    %v84 = vld [vmem:[#allocation8 + $0x10] sm:$0xff]
    %v85 = vld [vmem:[#allocation8 + $0x18] sm:$0xff]
    %v86 = vld [vmem:[#allocation8 + $0x20] sm:$0xff]
    %v87 = vld [vmem:[#allocation8 + $0x28] sm:$0xff]
    %v88 = vld [vmem:[#allocation8 + $0x30] sm:$0xff]
    %v89 = vld [vmem:[#allocation8 + $0x38] sm:$0xff]
    %v90 = vld [vmem:[#allocation8 + $0x40] sm:$0xff]
    %v91 = vld [vmem:[#allocation8 + $0x48] sm:$0xff]
    %v92 = vld [vmem:[#allocation8 + $0x50] sm:$0xff]
    %v93 = vld [vmem:[#allocation8 + $0x58] sm:$0xff]
    %v94 = vld [vmem:[#allocation8 + $0x60] sm:$0xff]
    %v95 = vld [vmem:[#allocation8 + $0x68] sm:$0xff]
    %v96 = vld [vmem:[#allocation8 + $0x70] sm:$0xff]
    %v97 = vld [vmem:[#allocation8 + $0x78] sm:$0xff]
    %98 = vmatprep.subr.mxu0 0.0
    %99 = vmatpush1.msra.mxu0 %v97
    %100 = vmatprep.subr.mxu0 0.0
    %101 = vmatpush1.msra.mxu0 %v96
    %102 = vmatprep.subr.mxu0 0.0
    %103 = vmatpush1.msra.mxu0 %v95
    %104 = vmatprep.subr.mxu0 0.0
    %105 = vmatpush1.msra.mxu0 %v94
    %106 = vmatprep.subr.mxu0 0.0
    %107 = vmatpush1.msra.mxu0 %v93
    %108 = vmatprep.subr.mxu0 0.0
    %109 = vmatpush1.msra.mxu0 %v92
    %110 = vmatprep.subr.mxu0 0.0
    %111 = vmatpush1.msra.mxu0 %v91
    %112 = vmatprep.subr.mxu0 0.0
    %113 = vmatpush1.msra.mxu0 %v90
    %114 = vmatprep.subr.mxu0 0.0
    %115 = vmatpush1.msra.mxu0 %v89
    %116 = vmatprep.subr.mxu0 0.0
    %117 = vmatpush1.msra.mxu0 %v88
    %118 = vmatprep.subr.mxu0 0.0
    %119 = vmatpush1.msra.mxu0 %v87
    %120 = vmatprep.subr.mxu0 0.0
    %121 = vmatpush1.msra.mxu0 %v86
    %122 = vmatprep.subr.mxu0 0.0
    %123 = vmatpush1.msra.mxu0 %v85
    %124 = vmatprep.subr.mxu0 0.0
    %125 = vmatpush1.msra.mxu0 %v84
    %126 = vmatprep.subr.mxu0 0.0
    %127 = vmatpush1.msra.mxu0 %v83
    %128 = vmatprep.subr.mxu0 0.0
    %129 = vmatpush1.msra.mxu0 %v82
    %130 = vmatprep.subr.mxu0 0.0
    %131 = vmatpush2.msra.mxu0 0.0
    %132 = vmatprep.subr.mxu0 0.0
    %133 = vmatpush2.msra.mxu0 0.0
    %134 = vmatprep.subr.mxu0 0.0
    %135 = vmatpush2.msra.mxu0 0.0
    %136 = vmatprep.subr.mxu0 0.0
    %137 = vmatpush2.msra.mxu0 0.0
    %138 = vmatprep.subr.mxu0 0.0
    %139 = vmatpush2.msra.mxu0 0.0
    %140 = vmatprep.subr.mxu0 0.0
    %141 = vmatpush2.msra.mxu0 0.0
    %142 = vmatprep.subr.mxu0 0.0
    %143 = vmatpush2.msra.mxu0 0.0
    %144 = vmatprep.subr.mxu0 0.0
    %145 = vmatpush2.msra.mxu0 0.0
    %146 = vmatprep.subr.mxu0 0.0
    %147 = vmatpush2.msra.mxu0 0.0
    %148 = vmatprep.subr.mxu0 0.0
    %149 = vmatpush2.msra.mxu0 0.0
    %150 = vmatprep.subr.mxu0 0.0
    %151 = vmatpush2.msra.mxu0 0.0
    %152 = vmatprep.subr.mxu0 0.0
    %153 = vmatpush2.msra.mxu0 0.0
    %154 = vmatprep.subr.mxu0 0.0
    %155 = vmatpush2.msra.mxu0 0.0
    %156 = vmatprep.subr.mxu0 0.0
    %157 = vmatpush2.msra.mxu0 0.0
    %158 = vmatprep.subr.mxu0 0.0
    %159 = vmatpush2.msra.mxu0 0.0
    %160 = vmatprep.subr.mxu0 0.0
    %161 = vmatpush2.msra.mxu0 0.0
    %162 = vmatprep.mubr.f32.mxu0 0.0
    %163 = vmatmul.mubr.f32.gmra.mxu0 %v81
    %v164 = vpop.f32.mrf.mxu0
    %v165 = vadd.f32 0.0, %v164
    %v166 = vpop.f32.mrf.mxu0
    %167 = vdwg.mxu0
    %v168 = vxor.u32 %v165, 2147483648
    %v169 = vmul.f32 %v168, 1.442695
    %v170 = vpow.pop %v169
    %v171 = vadd.f32 %v170, 1.0
    %v172 = vrcp.pop %v171
    %v173 = vmul.f32 1.0, %v172
    %v174 = vtanh.pop %v165
    %176 = vrot.lane.b32.xlu0 %v73, 32
    %v177 = vpop.permute.xlu0 %176
    %v179 = vmul.f32 %v173, %v177
    %181 = vrot.lane.b32.xlu0 %v174, 64
    %v182 = vpop.permute.xlu0 %181
    %v184 = vmul.f32 %v173, %v182
    %186 = vrot.lane.b32.xlu0 %v184, 32
    %v187 = vpop.permute.xlu0 %186
    %v189 = vadd.f32 %v179, %v187
    %v190 = vtanh.pop %v189
    %192 = vrot.lane.b32.xlu0 %v190, 64
    %v193 = vpop.permute.xlu0 %192
    %v195 = vmul.f32 %v173, %v193
    %197 = vrot.lane.b32.xlu0 %v195, 32
    %v198 = vpop.permute.xlu0 %197
    %vm200 = vcmask 261120
    %201 = vst.msk [vmem:[#allocation10] sm:$0xff] %vm200, %v198
    %203 = vrot.lane.b32.xlu0 %v189, 96
    %v204 = vpop.permute.xlu0 %203
    %206 = vst.msk [vmem:[#allocation11] sm:$0xff] %vm200, %v204
    // Predicated region
    $region34: #{_forward_impl.1} parent=1 // pred_check
      _
    $region35: #{_forward_impl.1} parent=1 // pred_check_branch
      %208 = sbr.rel (0) target = $region37
    $region36: #{_forward_impl.1} parent=1 // pred_region
      %s210 = ssub.s32 128, 128
      %211 = vsyncadd [#allocation4], %s210
      %s213 = sshll.u32 [#allocation10], 4
      %s214 = int_to_ptr.vmem [resolvable:$true] %s213
      %216 = dma.vmem_to_hbm [thread:$0]  %s214, 128, %s4, [#allocation4]
    $region37: #{_forward_impl.1} parent=1 // pred_fallthru
      _
    // Predicated region
    $region38: #{_forward_impl.1} parent=1 // pred_check
      _
    $region39: #{_forward_impl.1} parent=1 // pred_check_branch
      %218 = sbr.rel (0) target = $region41
    $region40: #{_forward_impl.1} parent=1 // pred_region
      %s220 = ssub.s32 128, 128
      %221 = vsyncadd [#allocation12], %s220
      %s223 = sshll.u32 [#allocation11], 4
      %s224 = int_to_ptr.vmem [resolvable:$true] %s223
      %226 = dma.vmem_to_hbm [thread:$0]  %s224, 128, %s5, [#allocation12]
    $region41: #{_forward_impl.1} parent=1 // pred_fallthru
      _
    // Predicated region
    $region42: #{_forward_impl.1} parent=1 // pred_check
      _
    $region43: #{_forward_impl.1} parent=1 // pred_check_branch
      %228 = sbr.rel (0) target = $region45
    $region44: #{_forward_impl.1} parent=1 // pred_region
      %229 = dma.done [#allocation4], 128
    $region45: #{_forward_impl.1} parent=1 // pred_fallthru
      _
    // Predicated region
    $region46: #{_forward_impl.1} parent=1 // pred_check
      _
    $region47: #{_forward_impl.1} parent=1 // pred_check_branch
      %231 = sbr.rel (0) target = $region49
    $region48: #{_forward_impl.1} parent=1 // pred_region
      %232 = dma.done [#allocation12], 128
    $region49: #{_forward_impl.1} parent=1 // pred_fallthru
      _
    %233 = vsyncpa [#allocation3], 1
    %234 = vsyncpa [#allocation6], 1
    %235 = vsyncpa [#allocation9], 1
    %236 = vsyncpa [#allocation4], 1
    %237 = vsyncpa [#allocation12], 1

</llo_original>
